<compile_context>
chip_gen: v5e
topology: v5e:2x2
jax: 0.10.0
libtpu: 0.0.40
codegen_flags: <defaults>
</compile_context>

<pallas_src>
import functools
import numpy as np
import jax
import jax.numpy as jnp
from jax.experimental import pallas as pl
from jax.experimental.pallas import tpu as pltpu


def _round_up(v, m):
    return ((v + m - 1) // m) * m


# ---------------------------------------------------------------------------
# Pallas kernels
# ---------------------------------------------------------------------------

def mlp_encoder_kernel(x_ref, w1_ref, b1_ref, w2_ref, b2_ref, w3_ref, b3_ref,
                       z_ref):
    """CPC encoder: Linear->ReLU->Linear->ReLU->Linear (Identity output).

    All operand dims are pre-padded to multiples of 128 lanes in the wrapper,
    so every matmul/store is lane-dense (no masked vst).
    """
    h = jnp.dot(x_ref[...], w1_ref[...], preferred_element_type=jnp.float32)
    h = jnp.maximum(h + b1_ref[...], 0.0)
    h = jnp.dot(h, w2_ref[...], preferred_element_type=jnp.float32)
    h = jnp.maximum(h + b2_ref[...], 0.0)
    z_ref[...] = (jnp.dot(h, w3_ref[...], preferred_element_type=jnp.float32)
                  + b3_ref[...])


def gru_kernel(x_ref, h0_ref, w_ih_ref, w_hh_ref, b_ih_ref, b_hh_ref,
               out_ref, h_scr, gi_scr, *, s_chunk, cp):
    """One time-chunk of a single-layer GRU, PyTorch gate convention (r, z, n).

    x_ref:   (s_chunk, BP, ZP)  time-major padded input chunk
    out_ref: (s_chunk, BP, CP)  time-major padded hidden states for this chunk
    h_scr:   (BP, CP) VMEM scratch carrying h across grid steps ("arbitrary" grid).
    gi_scr:  (s_chunk*BP, 3*CP) hoisted gate-fused input projections for the chunk.
    """
    bp = h0_ref.shape[0]
    zp = x_ref.shape[-1]

    @pl.when(pl.program_id(0) == 0)
    def _():
        h_scr[...] = h0_ref[...]

    # Hoisted + gate-fused input projection for the whole chunk: one MXU matmul.
    gi_scr[...] = (jnp.dot(x_ref[...].reshape(s_chunk * bp, zp), w_ih_ref[...],
                           preferred_element_type=jnp.float32) + b_ih_ref[...])

    b_hh = b_hh_ref[...]                       # (1, 3*CP)
    h = h_scr[...]                             # (BP, CP)

    # Bounded static loop (s_chunk <= 16 by construction); the chunked grid bounds
    # live ranges and compile time, so full unrolling here is safe.  All slice
    # starts are static and sublane/lane aligned (BP % 8 == 0, CP % 128 == 0).
    # TODO(synk): use pltpu.matmul_push_rhs/acc_lhs/pop to keep W_hh staged in the
    # MXU across the serial recurrence instead of re-pushing it every step.
    for t in range(s_chunk):
        gi = gi_scr[pl.ds(t * bp, bp), :]                                  # (BP, 3CP)
        gh = jnp.dot(h, w_hh_ref[...], preferred_element_type=jnp.float32) + b_hh
        r = jax.nn.sigmoid(gi[:, :cp] + gh[:, :cp])
        u = jax.nn.sigmoid(gi[:, cp:2 * cp] + gh[:, cp:2 * cp])
        n = jnp.tanh(gi[:, 2 * cp:] + r * gh[:, 2 * cp:])
        h = (1.0 - u) * n + u * h
        out_ref[t] = h

    h_scr[...] = h


def nce_kernel(enc_ref, ct_ref, wk_ref, bk_ref, nce_ref, corr_ref, *, b_real):
    """One NCE head k (grid axis). Padded batch rows/cols are masked.

    pred_k  = c_t @ Wk_k^T + b_k                  (BP, ZP)
    total   = z_{t+k+1} @ pred_k^T                (BP, BP)
    nce_k   = sum(diag(log_softmax(total, dim=0))) over the real batch
    corr_k  = #(argmax(total, dim=0) == arange(batch)) over the real batch
    """
    bp = ct_ref.shape[0]

    pred = (jnp.dot(ct_ref[...], wk_ref[0], preferred_element_type=jnp.float32)
            + bk_ref[0])                                                    # (BP, ZP)
    enc_k = enc_ref[0]                                                      # (BP, ZP)
    # total[a, b] = <enc_k[a], pred[b]>  ==  torch.mm(enc, pred.T)
    total = jax.lax.dot_general(enc_k, pred, (((1,), (1,)), ((), ())),
                                preferred_element_type=jnp.float32)         # (BP, BP)

    row = jax.lax.broadcasted_iota(jnp.int32, (bp, bp), 0)
    col = jax.lax.broadcasted_iota(jnp.int32, (bp, bp), 1)
    valid_row = row < b_real
    total = jnp.where(valid_row, total, -1e30)     # exclude padded batch rows

    # log-softmax over dim 0 (per column)
    m = jnp.max(total, axis=0, keepdims=True)                               # (1, BP)
    lse = m + jnp.log(jnp.sum(jnp.exp(total - m), axis=0, keepdims=True))
    logsm = total - lse
    nce_val = jnp.sum(jnp.where((row == col) & valid_row, logsm, 0.0))

    # argmax over dim 0 (softmax is monotone), first-index tie-break
    is_max = total >= m
    am = jnp.min(jnp.where(is_max, row, bp), axis=0, keepdims=True)         # (1, BP)
    col1 = jax.lax.broadcasted_iota(jnp.int32, (1, bp), 1)
    corr_val = jnp.sum(((am == col1) & (col1 < b_real)).astype(jnp.int32))

    # Lane-dense result rows; scalar is read back as [..., 0, 0] in the wrapper.
    nce_ref[...] = jnp.full(nce_ref.shape, nce_val, jnp.float32)
    corr_ref[...] = jnp.full(corr_ref.shape, corr_val, jnp.int32)


# ---------------------------------------------------------------------------
# Wrappers
# ---------------------------------------------------------------------------

def encoder_pallas(x2d, w1, b1, w2, b2, w3, b3):
    n, op = x2d.shape
    h1p = w1.shape[1]
    h2p = w2.shape[1]
    zp = w3.shape[1]

    TILE_R = 2048                       # big row tile: grid-step overhead amortized
    tile_r = n if n <= TILE_R else TILE_R
    grid = (pl.cdiv(n, tile_r),)

    flops = 2 * n * (op * h1p + h1p * h2p + h2p * zp)
    bytes_accessed = 4 * (n * op + n * zp + op * h1p + h1p * h2p + h2p * zp
                          + h1p + h2p + zp)

    return pl.pallas_call(
        mlp_encoder_kernel,
        grid=grid,
        in_specs=[
            pl.BlockSpec((tile_r, op), lambda i: (i, 0)),    # x rows (tiled)
            pl.BlockSpec((op, h1p), lambda i: (0, 0)),       # resident weights
            pl.BlockSpec((1, h1p), lambda i: (0, 0)),
            pl.BlockSpec((h1p, h2p), lambda i: (0, 0)),
            pl.BlockSpec((1, h2p), lambda i: (0, 0)),
            pl.BlockSpec((h2p, zp), lambda i: (0, 0)),
            pl.BlockSpec((1, zp), lambda i: (0, 0)),
        ],
        out_specs=pl.BlockSpec((tile_r, zp), lambda i: (i, 0)),
        out_shape=jax.ShapeDtypeStruct((n, zp), jnp.float32),
        cost_estimate=pl.CostEstimate(flops=flops, transcendentals=0,
                                      bytes_accessed=bytes_accessed),
        compiler_params=pltpu.CompilerParams(
            dimension_semantics=("parallel",),
            vmem_limit_bytes=32 * 1024 * 1024),
    )(x2d, w1, b1, w2, b2, w3, b3)


def _pick_time_chunk(s, bp, zp, cp, budget_bytes=24 * 1024 * 1024, max_chunk=16):
    """Largest divisor of s (<= max_chunk) keeping per-chunk VMEM under budget."""
    per_step = 4 * bp * (2 * zp + 5 * cp)   # x(double-buf) + out(double-buf) + gi scratch
    cap = max(1, min(max_chunk, budget_bytes // max(per_step, 1)))
    for c in range(min(s, cap), 0, -1):
        if s % c == 0:
            return c
    return 1


def gru_pallas(z_tm, h0, w_ih, w_hh, b_ih, b_hh):
    """z_tm: (S, BP, ZP) time-major padded input, h0: (BP, CP). Returns (S, BP, CP)."""
    s, bp, zp = z_tm.shape
    cp = h0.shape[-1]
    s_chunk = _pick_time_chunk(s, bp, zp, cp)
    grid = (s // s_chunk,)

    flops = 2 * s * bp * zp * 3 * cp + 2 * s * bp * cp * 3 * cp + 12 * s * bp * cp
    bytes_accessed = 4 * (s * bp * zp + s * bp * cp + bp * cp
                          + zp * 3 * cp + cp * 3 * cp + 2 * 3 * cp)

    return pl.pallas_call(
        functools.partial(gru_kernel, s_chunk=s_chunk, cp=cp),
        grid=grid,
        in_specs=[
            pl.BlockSpec((s_chunk, bp, zp), lambda i: (i, 0, 0)),   # streamed x chunk
            pl.BlockSpec((bp, cp), lambda i: (0, 0)),               # h0 (resident)
            pl.BlockSpec((zp, 3 * cp), lambda i: (0, 0)),           # gate-fused W_ih
            pl.BlockSpec((cp, 3 * cp), lambda i: (0, 0)),           # gate-fused W_hh
            pl.BlockSpec((1, 3 * cp), lambda i: (0, 0)),
            pl.BlockSpec((1, 3 * cp), lambda i: (0, 0)),
        ],
        out_specs=pl.BlockSpec((s_chunk, bp, cp), lambda i: (i, 0, 0)),
        out_shape=jax.ShapeDtypeStruct((s, bp, cp), jnp.float32),
        scratch_shapes=[pltpu.VMEM((bp, cp), jnp.float32),               # h carry
                        pltpu.VMEM((s_chunk * bp, 3 * cp), jnp.float32)],  # gi chunk
        cost_estimate=pl.CostEstimate(flops=flops, transcendentals=3 * s * bp * cp,
                                      bytes_accessed=bytes_accessed),
        compiler_params=pltpu.CompilerParams(
            dimension_semantics=("arbitrary",),   # serial recurrence: h carried in scratch
            vmem_limit_bytes=48 * 1024 * 1024),   # chunk budget keeps v7x (64 MiB) safe
    )(z_tm, h0, w_ih, w_hh, b_ih, b_hh)


def nce_pallas(enc_slab, c_t, wk, bk, batch):
    """enc_slab: (T, BP, ZP), c_t: (BP, CP), wk: (T, CP, ZP), bk: (T, 1, ZP)."""
    t, bp, zp = enc_slab.shape
    cp = c_t.shape[-1]

    flops = t * (2 * bp * cp * zp + 2 * bp * bp * zp + 8 * bp * bp)
    bytes_accessed = 4 * (t * bp * zp + bp * cp + t * cp * zp + t * zp + 2 * t * 8 * 128)

    nce_k, corr_k = pl.pallas_call(
        functools.partial(nce_kernel, b_real=batch),
        grid=(t,),
        in_specs=[
            pl.BlockSpec((1, bp, zp), lambda k: (k, 0, 0)),   # head-k encode sample
            pl.BlockSpec((bp, cp), lambda k: (0, 0)),         # c_t (resident)
            pl.BlockSpec((1, cp, zp), lambda k: (k, 0, 0)),   # head-k weight (leading-dim idx)
            pl.BlockSpec((1, 1, zp), lambda k: (k, 0, 0)),    # head-k bias
        ],
        out_specs=(pl.BlockSpec((1, 8, 128), lambda k: (k, 0, 0)),
                   pl.BlockSpec((1, 8, 128), lambda k: (k, 0, 0))),
        out_shape=(jax.ShapeDtypeStruct((t, 8, 128), jnp.float32),
                   jax.ShapeDtypeStruct((t, 8, 128), jnp.int32)),
        cost_estimate=pl.CostEstimate(flops=flops, transcendentals=t * bp * bp,
                                      bytes_accessed=bytes_accessed),
        compiler_params=pltpu.CompilerParams(
            dimension_semantics=("parallel",),    # T independent heads -> both TCs on v7x
            vmem_limit_bytes=16 * 1024 * 1024),
    )(enc_slab, c_t, wk, bk)
    return nce_k[:, 0, 0], corr_k[:, 0, 0]


# ---------------------------------------------------------------------------
# Parameter packing / padding helpers (plain XLA glue)
# ---------------------------------------------------------------------------

def _pad2(a, rows, cols):
    return jnp.pad(a, ((0, rows - a.shape[0]), (0, cols - a.shape[1])))


def _fuse_gate_weight(w_t, in_pad, c, cp):
    """(in_dim, 3c) PyTorch (r,z,n) gate layout -> (in_pad, 3*cp), each gate lane-padded."""
    parts = [_pad2(w_t[:, g * c:(g + 1) * c], in_pad, cp) for g in range(3)]
    return jnp.concatenate(parts, axis=1)


def _fuse_gate_bias(b, c, cp):
    parts = [jnp.pad(b[g * c:(g + 1) * c], (0, cp - c)) for g in range(3)]
    return jnp.concatenate(parts)[None, :]


def cpc_forward(x, c_hidden, params, timestep, t_samples):
    """x: (B, S, obs_dim) float32, c_hidden: (B, c_dim) (GRU h0, layer dim squeezed)."""
    batch, seq_len, obs_dim = x.shape
    assert timestep < seq_len
    assert isinstance(t_samples, int)

    h1 = params['enc_w1'].shape[0]
    h2 = params['enc_w2'].shape[0]
    z_dim = params['enc_w3'].shape[0]
    c_dim = c_hidden.shape[-1]

    # (8, 128)-aligned padded sizes; zero padding is inert (see kernel docstrings),
    # padded batch rows are masked inside the NCE kernel.
    bp = _round_up(batch, 8)
    op = _round_up(obs_dim, 128)
    h1p = _round_up(h1, 128)
    h2p = _round_up(h2, 128)
    zp = _round_up(z_dim, 128)
    cp = _round_up(c_dim, 128)

    # ---- pack + pad parameters ----
    w1 = _pad2(params['enc_w1'].T, op, h1p)
    b1 = _pad2(params['enc_b1'][None, :], 1, h1p)
    w2 = _pad2(params['enc_w2'].T, h1p, h2p)
    b2 = _pad2(params['enc_b2'][None, :], 1, h2p)
    w3 = _pad2(params['enc_w3'].T, h2p, zp)
    b3 = _pad2(params['enc_b3'][None, :], 1, zp)

    w_ih = _fuse_gate_weight(params['gru_w_ih'].T, zp, c_dim, cp)    # (ZP, 3CP)
    w_hh = _fuse_gate_weight(params['gru_w_hh'].T, cp, c_dim, cp)    # (CP, 3CP)
    b_ih = _fuse_gate_bias(params['gru_b_ih'], c_dim, cp)            # (1, 3CP)
    b_hh = _fuse_gate_bias(params['gru_b_hh'], c_dim, cp)            # (1, 3CP)

    wk = jnp.pad(jnp.transpose(params['wk_w'], (0, 2, 1)),
                 ((0, 0), (0, cp - c_dim), (0, zp - z_dim)))         # (T, CP, ZP)
    bk = jnp.pad(params['wk_b'], ((0, 0), (0, zp - z_dim)))[:, None, :]   # (T, 1, ZP)

    # ---- time-major activation path (no HBM transposes between kernels) ----
    x_tm = jnp.pad(jnp.transpose(x, (1, 0, 2)),
                   ((0, 0), (0, bp - batch), (0, op - obs_dim)))     # (S, BP, OP)
    z2d = encoder_pallas(x_tm.reshape(seq_len * bp, op), w1, b1, w2, b2, w3, b3)
    z_tm = z2d.reshape(seq_len, bp, zp)                              # (S, BP, ZP)

    # Single GRU pass over the full sequence; the prefix GRU of the original code
    # produces a strict prefix of these states (same h0, causal), so c_t is read
    # directly from the full-sequence output.
    h0 = jnp.pad(c_hidden, ((0, bp - batch), (0, cp - c_dim)))       # (BP, CP)
    lat_tm = gru_pallas(z_tm, h0, w_ih, w_hh, b_ih, b_hh)            # (S, BP, CP)

    latents = jnp.transpose(lat_tm[:, :batch, :c_dim], (1, 0, 2))    # (B, S, C)
    c_t = lat_tm[t_samples]                                          # (BP, CP)
    enc_slab = z_tm[t_samples + 1:t_samples + 1 + timestep]          # (T, BP, ZP)

    nce_per_k, corr_per_k = nce_pallas(enc_slab, c_t, wk, bk, batch)
    nce = jnp.sum(nce_per_k) / (-1.0 * batch * timestep)
    accuracy = corr_per_k[-1].astype(jnp.float32) / batch   # last head wins (torch semantics)
    return accuracy, nce, latents


# ---------------------------------------------------------------------------
# Deterministic parameter init (mirrors shapes from CPC.__init__)
# ---------------------------------------------------------------------------

def init_params(key, obs_dim, hidden_sizes, z_dim, c_dim, timestep):
    h1, h2 = hidden_sizes
    ks = jax.random.split(key, 12)

    def kaiming_fan_out(k, shape, fan_out):
        return jax.random.normal(k, shape, jnp.float32) * np.sqrt(2.0 / fan_out)

    def uniform_bias(k, shape, fan_in):
        bound = 1.0 / np.sqrt(fan_in)
        return jax.random.uniform(k, shape, jnp.float32, -bound, bound)

    return {
        'enc_w1': kaiming_fan_out(ks[0], (h1, obs_dim), h1),
        'enc_b1': uniform_bias(ks[1], (h1,), obs_dim),
        'enc_w2': kaiming_fan_out(ks[2], (h2, h1), h2),
        'enc_b2': uniform_bias(ks[3], (h2,), h1),
        'enc_w3': kaiming_fan_out(ks[4], (z_dim, h2), z_dim),
        'enc_b3': uniform_bias(ks[5], (z_dim,), h2),
        'gru_w_ih': kaiming_fan_out(ks[6], (3 * c_dim, z_dim), 3 * c_dim),
        'gru_w_hh': kaiming_fan_out(ks[7], (3 * c_dim, c_dim), 3 * c_dim),
        'gru_b_ih': uniform_bias(ks[8], (3 * c_dim,), c_dim),
        'gru_b_hh': uniform_bias(ks[9], (3 * c_dim,), c_dim),
        'wk_w': kaiming_fan_out(ks[10], (timestep, z_dim, c_dim), z_dim),
        'wk_b': uniform_bias(ks[11], (timestep, z_dim), c_dim),
    }


# ---------------------------------------------------------------------------
# Pure-JAX reference (sanity check of the Pallas path)
# ---------------------------------------------------------------------------

def reference_forward(x, c_hidden, p, timestep, t):
    batch, seq_len, obs_dim = x.shape

    def enc(v):
        h = jnp.maximum(v @ p['enc_w1'].T + p['enc_b1'], 0.0)
        h = jnp.maximum(h @ p['enc_w2'].T + p['enc_b2'], 0.0)
        return h @ p['enc_w3'].T + p['enc_b3']

    z = enc(x.reshape(batch * seq_len, obs_dim)).reshape(batch, seq_len, -1)

    C = c_hidden.shape[-1]

    def gru(zs, h0):
        def step(h, xt):
            gi = xt @ p['gru_w_ih'].T + p['gru_b_ih']
            gh = h @ p['gru_w_hh'].T + p['gru_b_hh']
            r = jax.nn.sigmoid(gi[:, :C] + gh[:, :C])
            u = jax.nn.sigmoid(gi[:, C:2 * C] + gh[:, C:2 * C])
            n = jnp.tanh(gi[:, 2 * C:] + r * gh[:, 2 * C:])
            hn = (1.0 - u) * n + u * h
            return hn, hn
        _, outs = jax.lax.scan(step, h0, jnp.transpose(zs, (1, 0, 2)))
        return jnp.transpose(outs, (1, 0, 2))

    latents = gru(z, c_hidden)
    output = gru(z[:, :t + 1], c_hidden)
    c_t = output[:, t]

    nce = 0.0
    correct = 0
    for i in range(timestep):
        enc_i = z[:, t + 1 + i]
        pred_i = c_t @ p['wk_w'][i].T + p['wk_b'][i]
        total = enc_i @ pred_i.T
        logsm = jax.nn.log_softmax(total, axis=0)
        nce = nce + jnp.sum(jnp.diag(logsm))
        correct = jnp.sum(jnp.argmax(total, axis=0) == jnp.arange(batch))
    nce = nce / (-1.0 * batch * timestep)
    accuracy = correct.astype(jnp.float32) / batch
    return accuracy, nce, latents


# ---------------------------------------------------------------------------

if __name__ == "__main__":
    timestep = 3
    batch, seq_len, obs_dim = 4, 8, 16
    hidden_sizes = (32, 32)
    z_dim, c_dim = 16, 32

    root = jax.random.PRNGKey(0)
    k_param, k_x, k_t = jax.random.split(root, 3)
    params = init_params(k_param, obs_dim, hidden_sizes, z_dim, c_dim, timestep)

    x = jax.random.normal(k_x, (batch, seq_len, obs_dim), jnp.float32)
    c_hidden = jnp.zeros((batch, c_dim), jnp.float32)   # == init_hidden, layer dim squeezed

    # TODO(synk): torch.randint draw for t_samples replaced by a deterministic jax.random draw.
    start = seq_len // 2 if seq_len - timestep > seq_len // 2 else 0
    t_samples = int(jax.random.randint(k_t, (), start, seq_len - timestep))

    accuracy, nce, latents = cpc_forward(x, c_hidden, params, timestep, t_samples)
    jax.block_until_ready((accuracy, nce, latents))

    acc_ref, nce_ref, lat_ref = reference_forward(x, c_hidden, params, timestep, t_samples)
    assert latents.shape == (batch, seq_len, c_dim)
    assert np.isfinite(float(nce))
    assert np.allclose(np.asarray(latents), np.asarray(lat_ref), atol=1e-2, rtol=1e-2)
    assert np.allclose(float(nce), float(nce_ref), atol=1e-2, rtol=1e-2)
    assert abs(float(accuracy) - float(acc_ref)) < 1e-6

    print("KERNEL_OK")
</pallas_src>

<mosaic_0001>
module attributes {stable_mosaic.version = 11 : i64} {
  func.func @mlp_encoder_kernel(%arg0: i32, %arg1: memref<64x128xf32, #tpu.memory_space<vmem>>, %arg2: memref<128x128xf32, #tpu.memory_space<vmem>>, %arg3: memref<1x128xf32, #tpu.memory_space<vmem>>, %arg4: memref<128x128xf32, #tpu.memory_space<vmem>>, %arg5: memref<1x128xf32, #tpu.memory_space<vmem>>, %arg6: memref<128x128xf32, #tpu.memory_space<vmem>>, %arg7: memref<1x128xf32, #tpu.memory_space<vmem>>, %arg8: memref<64x128xf32, #tpu.memory_space<vmem>>) attributes {dimension_semantics = [#tpu.dimension_semantics<parallel>], iteration_bounds = array<i64: 1>, scalar_prefetch = 0 : i64, scratch_operands = 0 : i64, tpu.core_type = #tpu.core_type<tc>, window_params = [{transform_indices = @transform_0, window_bounds = array<i64: 64, 128>}, {pipeline_mode = #tpu.pipeline_mode<synchronous>, transform_indices = @transform_1, window_bounds = array<i64: 128, 128>}, {pipeline_mode = #tpu.pipeline_mode<synchronous>, transform_indices = @transform_2, window_bounds = array<i64: 1, 128>}, {pipeline_mode = #tpu.pipeline_mode<synchronous>, transform_indices = @transform_3, window_bounds = array<i64: 128, 128>}, {pipeline_mode = #tpu.pipeline_mode<synchronous>, transform_indices = @transform_4, window_bounds = array<i64: 1, 128>}, {pipeline_mode = #tpu.pipeline_mode<synchronous>, transform_indices = @transform_5, window_bounds = array<i64: 128, 128>}, {pipeline_mode = #tpu.pipeline_mode<synchronous>, transform_indices = @transform_6, window_bounds = array<i64: 1, 128>}, {transform_indices = @transform_7, window_bounds = array<i64: 64, 128>}]} {
    %c0 = arith.constant 0 : index
    %c0_0 = arith.constant 0 : index
    %0 = vector.load %arg1[%c0, %c0_0] : memref<64x128xf32, #tpu.memory_space<vmem>>, vector<64x128xf32>
    %c0_1 = arith.constant 0 : index
    %c0_2 = arith.constant 0 : index
    %1 = vector.load %arg2[%c0_1, %c0_2] : memref<128x128xf32, #tpu.memory_space<vmem>>, vector<128x128xf32>
    %cst = arith.constant dense<0.000000e+00> : vector<64x128xf32>
    %2 = tpu.matmul %0, %1, %cst {dimension_numbers = #tpu.dot_dimension_numbers<[1], [0], [0], [1], [0, 0, 1, 1], [], []>} : vector<64x128xf32>, vector<128x128xf32>, vector<64x128xf32> -> vector<64x128xf32>
    %c0_3 = arith.constant 0 : index
    %c0_4 = arith.constant 0 : index
    %3 = vector.load %arg3[%c0_3, %c0_4] : memref<1x128xf32, #tpu.memory_space<vmem>>, vector<1x128xf32>
    %4 = vector.broadcast %3 : vector<1x128xf32> to vector<64x128xf32>
    %5 = arith.addf %2, %4 : vector<64x128xf32>
    %cst_5 = arith.constant 0.000000e+00 : f32
    %6 = vector.broadcast %cst_5 : f32 to vector<64x128xf32>
    %7 = arith.maximumf %5, %6 : vector<64x128xf32>
    %c0_6 = arith.constant 0 : index
    %c0_7 = arith.constant 0 : index
    %8 = vector.load %arg4[%c0_6, %c0_7] : memref<128x128xf32, #tpu.memory_space<vmem>>, vector<128x128xf32>
    %cst_8 = arith.constant dense<0.000000e+00> : vector<64x128xf32>
    %9 = tpu.matmul %7, %8, %cst_8 {dimension_numbers = #tpu.dot_dimension_numbers<[1], [0], [0], [1], [0, 0, 1, 1], [], []>} : vector<64x128xf32>, vector<128x128xf32>, vector<64x128xf32> -> vector<64x128xf32>
    %c0_9 = arith.constant 0 : index
    %c0_10 = arith.constant 0 : index
    %10 = vector.load %arg5[%c0_9, %c0_10] : memref<1x128xf32, #tpu.memory_space<vmem>>, vector<1x128xf32>
    %11 = vector.broadcast %10 : vector<1x128xf32> to vector<64x128xf32>
    %12 = arith.addf %9, %11 : vector<64x128xf32>
    %cst_11 = arith.constant 0.000000e+00 : f32
    %13 = vector.broadcast %cst_11 : f32 to vector<64x128xf32>
    %14 = arith.maximumf %12, %13 : vector<64x128xf32>
    %c0_12 = arith.constant 0 : index
    %c0_13 = arith.constant 0 : index
    %15 = vector.load %arg6[%c0_12, %c0_13] : memref<128x128xf32, #tpu.memory_space<vmem>>, vector<128x128xf32>
    %cst_14 = arith.constant dense<0.000000e+00> : vector<64x128xf32>
    %16 = tpu.matmul %14, %15, %cst_14 {dimension_numbers = #tpu.dot_dimension_numbers<[1], [0], [0], [1], [0, 0, 1, 1], [], []>} : vector<64x128xf32>, vector<128x128xf32>, vector<64x128xf32> -> vector<64x128xf32>
    %c0_15 = arith.constant 0 : index
    %c0_16 = arith.constant 0 : index
    %17 = vector.load %arg7[%c0_15, %c0_16] : memref<1x128xf32, #tpu.memory_space<vmem>>, vector<1x128xf32>
    %18 = vector.broadcast %17 : vector<1x128xf32> to vector<64x128xf32>
    %19 = arith.addf %16, %18 : vector<64x128xf32>
    %c0_17 = arith.constant 0 : index
    %c0_18 = arith.constant 0 : index
    %20 = vector.load %arg8[%c0_17, %c0_18] : memref<64x128xf32, #tpu.memory_space<vmem>>, vector<64x128xf32>
    tpu.vector_store %arg8[%c0_17, %c0_18], %19 {strides = array<i32>} : memref<64x128xf32, #tpu.memory_space<vmem>>, vector<64x128xf32>,
    return
  }
  func.func @transform_0(%arg0: i32) -> (i32, i32) {
    %c0_i32 = arith.constant 0 : i32
    %c0_i32_0 = arith.constant 0 : i32
    return %arg0, %c0_i32 : i32, i32
  }
  func.func @transform_1(%arg0: i32) -> (i32, i32) {
    %c0_i32 = arith.constant 0 : i32
    %c0_i32_0 = arith.constant 0 : i32
    %c0_i32_1 = arith.constant 0 : i32
    return %c0_i32, %c0_i32_0 : i32, i32
  }
  func.func @transform_2(%arg0: i32) -> (i32, i32) {
    %c0_i32 = arith.constant 0 : i32
    %c0_i32_0 = arith.constant 0 : i32
    %c0_i32_1 = arith.constant 0 : i32
    return %c0_i32, %c0_i32_0 : i32, i32
  }
  func.func @transform_3(%arg0: i32) -> (i32, i32) {
    %c0_i32 = arith.constant 0 : i32
    %c0_i32_0 = arith.constant 0 : i32
    %c0_i32_1 = arith.constant 0 : i32
    return %c0_i32, %c0_i32_0 : i32, i32
  }
  func.func @transform_4(%arg0: i32) -> (i32, i32) {
    %c0_i32 = arith.constant 0 : i32
    %c0_i32_0 = arith.constant 0 : i32
    %c0_i32_1 = arith.constant 0 : i32
    return %c0_i32, %c0_i32_0 : i32, i32
  }
  func.func @transform_5(%arg0: i32) -> (i32, i32) {
    %c0_i32 = arith.constant 0 : i32
    %c0_i32_0 = arith.constant 0 : i32
    %c0_i32_1 = arith.constant 0 : i32
    return %c0_i32, %c0_i32_0 : i32, i32
  }
  func.func @transform_6(%arg0: i32) -> (i32, i32) {
    %c0_i32 = arith.constant 0 : i32
    %c0_i32_0 = arith.constant 0 : i32
    %c0_i32_1 = arith.constant 0 : i32
    return %c0_i32, %c0_i32_0 : i32, i32
  }
  func.func @transform_7(%arg0: i32) -> (i32, i32) {
    %c0_i32 = arith.constant 0 : i32
    %c0_i32_0 = arith.constant 0 : i32
    return %arg0, %c0_i32 : i32, i32
  }
}

</mosaic_0001>

<llo_original>
// kernel: tpu_custom_call.1
$region0: #{tpu_custom_call.1}
  #allocation0 [shape = 'u32[]', space=smem, size = 0x4, offset = 0x4, fixed_abs, tag = 'smem constant byte address 0x4 - core index']
  #allocation1 [shape = 'u32[72,128]{1,0:T(1,128)}', space=vmem, size = 0x9000, scoped, tag = 'internal scratch']
  %s0 = inlined_call_operand.hbm [shape: f32[64,128], index: 0, kind: input, shape index: {}]
  %s1 = inlined_call_operand.hbm [shape: f32[128,128], index: 1, kind: input, shape index: {}]
  %s2 = inlined_call_operand.vmem [shape: f32[1,128], index: 2, kind: input, shape index: {}]
  %s3 = inlined_call_operand.hbm [shape: f32[128,128], index: 3, kind: input, shape index: {}]
  %s4 = inlined_call_operand.vmem [shape: f32[1,128], index: 4, kind: input, shape index: {}]
  %s5 = inlined_call_operand.hbm [shape: f32[128,128], index: 5, kind: input, shape index: {}]
  %s6 = inlined_call_operand.vmem [shape: f32[1,128], index: 6, kind: input, shape index: {}]
  %s7 = inlined_call_operand.hbm [shape: f32[64,128], index: 7, kind: output, shape index: {}]
  %s8 = sld [smem:[#allocation0]]
  $region54: #{tpu_custom_call.1} parent=0
    _
  %s10 = ssub.s32 1, %s8
  %s11 = scalar_select 0, %s10, %s8
  $region1: #{tpu_custom_call.1} parent=0
    #allocation2 [shape = 'u8[32768]{0}', space=vmem, size = 0x8000, scoped, tag = 'input window, operand 0, single buffered']
    #allocation3 [shape = 's32[1]{0}', space=sflag, size = 0x4, scoped, tag = 'scoped memory for tpu_custom_call.1']
    #allocation4 [shape = 's32[1]{0}', space=sflag, size = 0x4, scoped, tag = 'scoped memory for tpu_custom_call.1']
    #allocation5 [shape = 'u8[65536]{0}', space=vmem, size = 0x10000, scoped, tag = 'input window, operand 1, single buffered']
    #allocation6 [shape = 's32[1]{0}', space=sflag, size = 0x4, scoped, tag = 'scoped memory for tpu_custom_call.1']
    #allocation7 [shape = 'u8[65536]{0}', space=vmem, size = 0x10000, scoped, tag = 'input window, operand 3, single buffered']
    #allocation8 [shape = 'u8[65536]{0}', space=vmem, size = 0x10000, scoped, tag = 'input window, operand 5, single buffered']
    #allocation9 [shape = 's32[1]{0}', space=sflag, size = 0x4, scoped, tag = 'scoped memory for tpu_custom_call.1']
    #allocation10 [shape = 'u8[32768]{0}', space=vmem, size = 0x8000, scoped, tag = 'output window, operand 0, single buffered']
    %12 = vsyncpa [#allocation3], 0
    %13 = vsyncpa [#allocation6], 0
    %14 = vsyncpa [#allocation9], 0
    %15 = vsyncpa [#allocation4], 0
    // Predicated region
    $region2: #{tpu_custom_call.1} parent=1 // pred_check
      _
    $region3: #{tpu_custom_call.1} parent=1 // pred_check_branch
      %17 = sbr.rel (0) target = $region5
    $region4: #{tpu_custom_call.1} parent=1 // pred_region
      %19 = vsyncadd [#allocation3], 0
      %s20 = sshll.u32 %s0, 4
      %s21 = int_to_ptr.hbm [resolvable:$true] %s20
      %s22 = sshll.u32 [#allocation2], 4
      %s23 = int_to_ptr.vmem [resolvable:$true] %s22
      %28 = dma.hbm_to_vmem [thread:$0]  %s21, 1024, %s23, [#allocation3], 128, 128, 8
    $region5: #{tpu_custom_call.1} parent=1 // pred_fallthru
      _
    // Predicated region
    $region6: #{tpu_custom_call.1} parent=1 // pred_check
      _
    $region7: #{tpu_custom_call.1} parent=1 // pred_check_branch
      %30 = sbr.rel (0) target = $region9
    $region8: #{tpu_custom_call.1} parent=1 // pred_region
      %32 = vsyncadd [#allocation6], 0
      %s33 = sshll.u32 %s1, 4
      %s34 = int_to_ptr.hbm [resolvable:$true] %s33
      %s35 = sshll.u32 [#allocation5], 4
      %s36 = int_to_ptr.vmem [resolvable:$true] %s35
      %41 = dma.hbm_to_vmem [thread:$0]  %s34, 2048, %s36, [#allocation6], 128, 128, 8
    $region9: #{tpu_custom_call.1} parent=1 // pred_fallthru
      _
    // Predicated region
    $region10: #{tpu_custom_call.1} parent=1 // pred_check
      _
    $region11: #{tpu_custom_call.1} parent=1 // pred_check_branch
      %43 = sbr.rel (0) target = $region13
    $region12: #{tpu_custom_call.1} parent=1 // pred_region
      _
    $region13: #{tpu_custom_call.1} parent=1 // pred_fallthru
      _
    // Predicated region
    $region14: #{tpu_custom_call.1} parent=1 // pred_check
      _
    $region15: #{tpu_custom_call.1} parent=1 // pred_check_branch
      %45 = sbr.rel (0) target = $region17
    $region16: #{tpu_custom_call.1} parent=1 // pred_region
      %47 = vsyncadd [#allocation6], 0
      %s48 = sshll.u32 %s3, 4
      %s49 = int_to_ptr.hbm [resolvable:$true] %s48
      %s50 = sshll.u32 [#allocation7], 4
      %s51 = int_to_ptr.vmem [resolvable:$true] %s50
      %56 = dma.hbm_to_vmem [thread:$0]  %s49, 2048, %s51, [#allocation6], 128, 128, 8
    $region17: #{tpu_custom_call.1} parent=1 // pred_fallthru
      _
    // Predicated region
    $region18: #{tpu_custom_call.1} parent=1 // pred_check
      _
    $region19: #{tpu_custom_call.1} parent=1 // pred_check_branch
      %58 = sbr.rel (0) target = $region21
    $region20: #{tpu_custom_call.1} parent=1 // pred_region
      _
    $region21: #{tpu_custom_call.1} parent=1 // pred_fallthru
      _
    // Predicated region
    $region22: #{tpu_custom_call.1} parent=1 // pred_check
      _
    $region23: #{tpu_custom_call.1} parent=1 // pred_check_branch
      %60 = sbr.rel (0) target = $region25
    $region24: #{tpu_custom_call.1} parent=1 // pred_region
      %62 = vsyncadd [#allocation9], 0
      %s63 = sshll.u32 %s5, 4
      %s64 = int_to_ptr.hbm [resolvable:$true] %s63
      %s65 = sshll.u32 [#allocation8], 4
      %s66 = int_to_ptr.vmem [resolvable:$true] %s65
      %71 = dma.hbm_to_vmem [thread:$0]  %s64, 2048, %s66, [#allocation9], 128, 128, 8
    $region25: #{tpu_custom_call.1} parent=1 // pred_fallthru
      _
    // Predicated region
    $region26: #{tpu_custom_call.1} parent=1 // pred_check
      _
    $region27: #{tpu_custom_call.1} parent=1 // pred_check_branch
      %73 = sbr.rel (0) target = $region29
    $region28: #{tpu_custom_call.1} parent=1 // pred_region
      _
    $region29: #{tpu_custom_call.1} parent=1 // pred_fallthru
      _
    // Predicated region
    $region30: #{tpu_custom_call.1} parent=1 // pred_check
      _
    $region31: #{tpu_custom_call.1} parent=1 // pred_check_branch
      %75 = sbr.rel (0) target = $region33
    $region32: #{tpu_custom_call.1} parent=1 // pred_region
      %77 = dma.done [#allocation3], 1024
    $region33: #{tpu_custom_call.1} parent=1 // pred_fallthru
      _
    // Predicated region
    $region34: #{tpu_custom_call.1} parent=1 // pred_check
      _
    $region35: #{tpu_custom_call.1} parent=1 // pred_check_branch
      %79 = sbr.rel (0) target = $region37
    $region36: #{tpu_custom_call.1} parent=1 // pred_region
      %81 = dma.done [#allocation6], 2048
    $region37: #{tpu_custom_call.1} parent=1 // pred_fallthru
      _
    // Predicated region
    $region38: #{tpu_custom_call.1} parent=1 // pred_check
      _
    $region39: #{tpu_custom_call.1} parent=1 // pred_check_branch
      %83 = sbr.rel (0) target = $region41
    $region40: #{tpu_custom_call.1} parent=1 // pred_region
      %85 = dma.done [#allocation6], 2048
    $region41: #{tpu_custom_call.1} parent=1 // pred_fallthru
      _
    // Predicated region
    $region42: #{tpu_custom_call.1} parent=1 // pred_check
      _
    $region43: #{tpu_custom_call.1} parent=1 // pred_check_branch
      %87 = sbr.rel (0) target = $region45
    $region44: #{tpu_custom_call.1} parent=1 // pred_region
      %89 = dma.done [#allocation9], 2048
    $region45: #{tpu_custom_call.1} parent=1 // pred_fallthru
      _
    %v90 = vld [vmem:[#allocation2] sm:$0xff]
    %v91 = vld [vmem:[#allocation2 + $0x8] sm:$0xff]
    %v92 = vld [vmem:[#allocation2 + $0x10] sm:$0xff]
    %v93 = vld [vmem:[#allocation2 + $0x18] sm:$0xff]
    %v94 = vld [vmem:[#allocation2 + $0x20] sm:$0xff]
    %v95 = vld [vmem:[#allocation2 + $0x28] sm:$0xff]
    %v96 = vld [vmem:[#allocation2 + $0x30] sm:$0xff]
    %v97 = vld [vmem:[#allocation2 + $0x38] sm:$0xff]
    %v98 = vld [vmem:[#allocation5] sm:$0xff]
    %v99 = vld [vmem:[#allocation5 + $0x8] sm:$0xff]
    %v100 = vld [vmem:[#allocation5 + $0x10] sm:$0xff]
    %v101 = vld [vmem:[#allocation5 + $0x18] sm:$0xff]
    %v102 = vld [vmem:[#allocation5 + $0x20] sm:$0xff]
    %v103 = vld [vmem:[#allocation5 + $0x28] sm:$0xff]
    %v104 = vld [vmem:[#allocation5 + $0x30] sm:$0xff]
    %v105 = vld [vmem:[#allocation5 + $0x38] sm:$0xff]
    %v106 = vld [vmem:[#allocation5 + $0x40] sm:$0xff]
    %v107 = vld [vmem:[#allocation5 + $0x48] sm:$0xff]
    %v108 = vld [vmem:[#allocation5 + $0x50] sm:$0xff]
    %v109 = vld [vmem:[#allocation5 + $0x58] sm:$0xff]
    %v110 = vld [vmem:[#allocation5 + $0x60] sm:$0xff]
    %v111 = vld [vmem:[#allocation5 + $0x68] sm:$0xff]
    %v112 = vld [vmem:[#allocation5 + $0x70] sm:$0xff]
    %v113 = vld [vmem:[#allocation5 + $0x78] sm:$0xff]
    %v114 = vld [vmem:[%s2] sm:$0x1]
    %v116 = vperm.slane %v114, 0
    %118 = vmatpush.msra.mxu0 %v113
    %119 = vmatpush.msra.mxu0 %v112
    %120 = vmatpush.msra.mxu0 %v111
    %121 = vmatpush.msra.mxu0 %v110
    %122 = vmatpush.msra.mxu0 %v109
    %123 = vmatpush.msra.mxu0 %v108
    %124 = vmatpush.msra.mxu0 %v107
    %125 = vmatpush.msra.mxu0 %v106
    %126 = vmatpush.msra.mxu0 %v105
    %127 = vmatpush.msra.mxu0 %v104
    %128 = vmatpush.msra.mxu0 %v103
    %129 = vmatpush.msra.mxu0 %v102
    %130 = vmatpush.msra.mxu0 %v101
    %131 = vmatpush.msra.mxu0 %v100
    %132 = vmatpush.msra.mxu0 %v99
    %133 = vmatpush.msra.mxu0 %v98
    %134 = vmatmul.f32.gmra.mxu0 %v90
    %v135 = vpop.f32.mrf.mxu0
    %v136 = vadd.f32 %v116, %v135
    %137 = vmatmul.f32.gmra.mxu0 %v91
    %v138 = vpop.f32.mrf.mxu0
    %v139 = vadd.f32 %v116, %v138
    %140 = vmatmul.f32.gmra.mxu0 %v92
    %v141 = vpop.f32.mrf.mxu0
    %v142 = vadd.f32 %v116, %v141
    %143 = vmatmul.f32.gmra.mxu0 %v93
    %v144 = vpop.f32.mrf.mxu0
    %v145 = vadd.f32 %v116, %v144
    %146 = vmatmul.f32.gmra.mxu0 %v94
    %v147 = vpop.f32.mrf.mxu0
    %v148 = vadd.f32 %v116, %v147
    %149 = vmatmul.f32.gmra.mxu0 %v95
    %v150 = vpop.f32.mrf.mxu0
    %v151 = vadd.f32 %v116, %v150
    %152 = vmatmul.f32.gmra.mxu0 %v96
    %v153 = vpop.f32.mrf.mxu0
    %v154 = vadd.f32 %v116, %v153
    %155 = vmatmul.f32.gmra.mxu0 %v97
    %v156 = vpop.f32.mrf.mxu0
    %v157 = vadd.f32 %v116, %v156
    %158 = vdwg.mxu0
    %v159 = vmax.f32 %v136, 0.0
    %v160 = vmax.f32 %v139, 0.0
    %v161 = vmax.f32 %v142, 0.0
    %v162 = vmax.f32 %v145, 0.0
    %v163 = vmax.f32 %v148, 0.0
    %v164 = vmax.f32 %v151, 0.0
    %v165 = vmax.f32 %v154, 0.0
    %v166 = vmax.f32 %v157, 0.0
    %v167 = vld [vmem:[#allocation7] sm:$0xff]
    %v168 = vld [vmem:[#allocation7 + $0x8] sm:$0xff]
    %v169 = vld [vmem:[#allocation7 + $0x10] sm:$0xff]
    %v170 = vld [vmem:[#allocation7 + $0x18] sm:$0xff]
    %v171 = vld [vmem:[#allocation7 + $0x20] sm:$0xff]
    %v172 = vld [vmem:[#allocation7 + $0x28] sm:$0xff]
    %v173 = vld [vmem:[#allocation7 + $0x30] sm:$0xff]
    %v174 = vld [vmem:[#allocation7 + $0x38] sm:$0xff]
    %v175 = vld [vmem:[#allocation7 + $0x40] sm:$0xff]
    %v176 = vld [vmem:[#allocation7 + $0x48] sm:$0xff]
    %v177 = vld [vmem:[#allocation7 + $0x50] sm:$0xff]
    %v178 = vld [vmem:[#allocation7 + $0x58] sm:$0xff]
    %v179 = vld [vmem:[#allocation7 + $0x60] sm:$0xff]
    %v180 = vld [vmem:[#allocation7 + $0x68] sm:$0xff]
    %v181 = vld [vmem:[#allocation7 + $0x70] sm:$0xff]
    %v182 = vld [vmem:[#allocation7 + $0x78] sm:$0xff]
    %v183 = vld [vmem:[%s4] sm:$0x1]
    %v185 = vperm.slane %v183, 0
    %187 = vmatpush.msra.mxu0 %v182
    %188 = vmatpush.msra.mxu0 %v181
    %189 = vmatpush.msra.mxu0 %v180
    %190 = vmatpush.msra.mxu0 %v179
    %191 = vmatpush.msra.mxu0 %v178
    %192 = vmatpush.msra.mxu0 %v177
    %193 = vmatpush.msra.mxu0 %v176
    %194 = vmatpush.msra.mxu0 %v175
    %195 = vmatpush.msra.mxu0 %v174
    %196 = vmatpush.msra.mxu0 %v173
    %197 = vmatpush.msra.mxu0 %v172
    %198 = vmatpush.msra.mxu0 %v171
    %199 = vmatpush.msra.mxu0 %v170
    %200 = vmatpush.msra.mxu0 %v169
    %201 = vmatpush.msra.mxu0 %v168
    %202 = vmatpush.msra.mxu0 %v167
    %203 = vmatmul.f32.gmra.mxu0 %v159
    %v204 = vpop.f32.mrf.mxu0
    %v205 = vadd.f32 %v185, %v204
    %206 = vmatmul.f32.gmra.mxu0 %v160
    %v207 = vpop.f32.mrf.mxu0
    %v208 = vadd.f32 %v185, %v207
    %209 = vmatmul.f32.gmra.mxu0 %v161
    %v210 = vpop.f32.mrf.mxu0
    %v211 = vadd.f32 %v185, %v210
    %212 = vmatmul.f32.gmra.mxu0 %v162
    %v213 = vpop.f32.mrf.mxu0
    %v214 = vadd.f32 %v185, %v213
    %215 = vmatmul.f32.gmra.mxu0 %v163
    %v216 = vpop.f32.mrf.mxu0
    %v217 = vadd.f32 %v185, %v216
    %218 = vmatmul.f32.gmra.mxu0 %v164
    %v219 = vpop.f32.mrf.mxu0
    %v220 = vadd.f32 %v185, %v219
    %221 = vmatmul.f32.gmra.mxu0 %v165
    %v222 = vpop.f32.mrf.mxu0
    %v223 = vadd.f32 %v185, %v222
    %224 = vmatmul.f32.gmra.mxu0 %v166
    %v225 = vpop.f32.mrf.mxu0
    %v226 = vadd.f32 %v185, %v225
    %227 = vdwg.mxu0
    %v228 = vmax.f32 %v205, 0.0
    %v229 = vmax.f32 %v208, 0.0
    %v230 = vmax.f32 %v211, 0.0
    %v231 = vmax.f32 %v214, 0.0
    %v232 = vmax.f32 %v217, 0.0
    %v233 = vmax.f32 %v220, 0.0
    %v234 = vmax.f32 %v223, 0.0
    %v235 = vmax.f32 %v226, 0.0
    %v236 = vld [vmem:[#allocation8] sm:$0xff]
    %v237 = vld [vmem:[#allocation8 + $0x8] sm:$0xff]
    %v238 = vld [vmem:[#allocation8 + $0x10] sm:$0xff]
    %v239 = vld [vmem:[#allocation8 + $0x18] sm:$0xff]
    %v240 = vld [vmem:[#allocation8 + $0x20] sm:$0xff]
    %v241 = vld [vmem:[#allocation8 + $0x28] sm:$0xff]
    %v242 = vld [vmem:[#allocation8 + $0x30] sm:$0xff]
    %v243 = vld [vmem:[#allocation8 + $0x38] sm:$0xff]
    %v244 = vld [vmem:[#allocation8 + $0x40] sm:$0xff]
    %v245 = vld [vmem:[#allocation8 + $0x48] sm:$0xff]
    %v246 = vld [vmem:[#allocation8 + $0x50] sm:$0xff]
    %v247 = vld [vmem:[#allocation8 + $0x58] sm:$0xff]
    %v248 = vld [vmem:[#allocation8 + $0x60] sm:$0xff]
    %v249 = vld [vmem:[#allocation8 + $0x68] sm:$0xff]
    %v250 = vld [vmem:[#allocation8 + $0x70] sm:$0xff]
    %v251 = vld [vmem:[#allocation8 + $0x78] sm:$0xff]
    %v252 = vld [vmem:[%s6] sm:$0x1]
    %v254 = vperm.slane %v252, 0
    %256 = vmatpush.msra.mxu0 %v251
    %257 = vmatpush.msra.mxu0 %v250
    %258 = vmatpush.msra.mxu0 %v249
    %259 = vmatpush.msra.mxu0 %v248
    %260 = vmatpush.msra.mxu0 %v247
    %261 = vmatpush.msra.mxu0 %v246
    %262 = vmatpush.msra.mxu0 %v245
    %263 = vmatpush.msra.mxu0 %v244
    %264 = vmatpush.msra.mxu0 %v243
    %265 = vmatpush.msra.mxu0 %v242
    %266 = vmatpush.msra.mxu0 %v241
    %267 = vmatpush.msra.mxu0 %v240
    %268 = vmatpush.msra.mxu0 %v239
    %269 = vmatpush.msra.mxu0 %v238
    %270 = vmatpush.msra.mxu0 %v237
    %271 = vmatpush.msra.mxu0 %v236
    %272 = vmatmul.f32.gmra.mxu0 %v228
    %v273 = vpop.f32.mrf.mxu0
    %v274 = vadd.f32 %v254, %v273
    %275 = vmatmul.f32.gmra.mxu0 %v229
    %v276 = vpop.f32.mrf.mxu0
    %v277 = vadd.f32 %v254, %v276
    %278 = vmatmul.f32.gmra.mxu0 %v230
    %v279 = vpop.f32.mrf.mxu0
    %v280 = vadd.f32 %v254, %v279
    %281 = vmatmul.f32.gmra.mxu0 %v231
    %v282 = vpop.f32.mrf.mxu0
    %v283 = vadd.f32 %v254, %v282
    %284 = vmatmul.f32.gmra.mxu0 %v232
    %v285 = vpop.f32.mrf.mxu0
    %v286 = vadd.f32 %v254, %v285
    %287 = vmatmul.f32.gmra.mxu0 %v233
    %v288 = vpop.f32.mrf.mxu0
    %v289 = vadd.f32 %v254, %v288
    %290 = vmatmul.f32.gmra.mxu0 %v234
    %v291 = vpop.f32.mrf.mxu0
    %v292 = vadd.f32 %v254, %v291
    %293 = vmatmul.f32.gmra.mxu0 %v235
    %v294 = vpop.f32.mrf.mxu0
    %v295 = vadd.f32 %v254, %v294
    %296 = vdwg.mxu0
    %297 = vst [vmem:[#allocation10] sm:$0xff] %v274
    %298 = vst [vmem:[#allocation10 + $0x8] sm:$0xff] %v277
    %299 = vst [vmem:[#allocation10 + $0x10] sm:$0xff] %v280
    %300 = vst [vmem:[#allocation10 + $0x18] sm:$0xff] %v283
    %301 = vst [vmem:[#allocation10 + $0x20] sm:$0xff] %v286
    %302 = vst [vmem:[#allocation10 + $0x28] sm:$0xff] %v289
    %303 = vst [vmem:[#allocation10 + $0x30] sm:$0xff] %v292
    %304 = vst [vmem:[#allocation10 + $0x38] sm:$0xff] %v295
    // Predicated region
    $region46: #{tpu_custom_call.1} parent=1 // pred_check
      _
    $region47: #{tpu_custom_call.1} parent=1 // pred_check_branch
      %306 = sbr.rel (0) target = $region49
    $region48: #{tpu_custom_call.1} parent=1 // pred_region
      %308 = vsyncadd [#allocation4], 0
      %s309 = sshll.u32 [#allocation10], 4
      %s310 = int_to_ptr.vmem [resolvable:$true] %s309
      %s311 = sshll.u32 %s7, 4
      %s312 = int_to_ptr.hbm [resolvable:$true] %s311
      %317 = dma.vmem_to_hbm [thread:$0]  %s310, 1024, %s312, [#allocation4], 128, 128, 8
    $region49: #{tpu_custom_call.1} parent=1 // pred_fallthru
      _
    // Predicated region
    $region50: #{tpu_custom_call.1} parent=1 // pred_check
      _
    $region51: #{tpu_custom_call.1} parent=1 // pred_check_branch
      %319 = sbr.rel (0) target = $region53
    $region52: #{tpu_custom_call.1} parent=1 // pred_region
      %321 = dma.done [#allocation4], 1024
    $region53: #{tpu_custom_call.1} parent=1 // pred_fallthru
      _
    %322 = vsyncpa [#allocation3], 1
    %323 = vsyncpa [#allocation6], 1
    %324 = vsyncpa [#allocation9], 1
    %325 = vsyncpa [#allocation4], 1

</llo_original>
